<compile_context>
chip_gen: v6e
topology: v6e:2x2x1
jax: 0.10.0
libtpu: 0.0.40
codegen_flags: <defaults>
</compile_context>

<pallas_src>
import jax
import jax.numpy as jnp
import numpy as np
from jax import lax
from jax.experimental import pallas as pl
from jax.experimental.pallas import tpu as pltpu

STRIDE_H = 300
KH = 3
PAD_H = 1

_TARGET_OUT_BLOCK = 3 * 1024 * 1024   # ~1-4 MiB per-step output block (perf review)


def _deconv_kernel(w_ref, b_ref, x_ref, xn_ref, o_ref):
    # w_ref : (KH*C_in*C_out,) f32 SMEM; index = (kh*C_in + ci)*C_out + co
    # b_ref : (C_out,)         f32 SMEM
    # x_ref : (C_in, TH, W)    input rows [i*TH, i*TH+TH)
    # xn_ref: (C_in, TH, W)    input rows [i*TH+1, i*TH+TH+1) (halo-shifted copy)
    # o_ref : (C_out, TH, 300*W) lane-dense block; block row r holds FINAL output
    #         rows [(i*TH+r)*300, (i*TH+r+1)*300) flattened along lanes.
    c_in, th, wd = x_ref.shape
    c_out = o_ref.shape[0]
    sw = o_ref.shape[2]

    # (1) Bias everywhere: splat-valued full-width stores (297 of every 300
    #     output rows are pure bias); cheap vst filler hidden under the DMA.
    for co in range(c_out):
        o_ref[co, :, :] = jnp.full((th, sw), b_ref[co], dtype=o_ref.dtype)

    # (2) Data segments.  Sub-tiled over rows with fori_loop so only a few
    #     (rs, W) values are live at once (bounded vreg pressure at large TH).
    if th % 32 == 0:
        rs = 32
    elif th % 16 == 0:
        rs = 16
    elif th % 8 == 0:
        rs = 8
    else:
        rs = th                      # small H (< 8): single shot
    n_sub = th // rs

    def sub_tile(t, carry):
        r0 = pl.multiple_of(t * rs, rs)
        for co in range(c_out):
            b_co = b_ref[co]
            acc1 = jnp.zeros((rs, wd), jnp.float32)   # tap kh=1 -> lane offset 0
            acc2 = jnp.zeros((rs, wd), jnp.float32)   # tap kh=2 -> lane offset W
            acc0 = jnp.zeros((rs, wd), jnp.float32)   # tap kh=0 of row+1 -> 299*W
            for ci in range(c_in):
                xc = x_ref[ci, pl.ds(r0, rs), :].astype(jnp.float32)
                acc1 = acc1 + w_ref[(1 * c_in + ci) * c_out + co] * xc
                acc2 = acc2 + w_ref[(2 * c_in + ci) * c_out + co] * xc
                xn = xn_ref[ci, pl.ds(r0, rs), :].astype(jnp.float32)
                acc0 = acc0 + w_ref[(0 * c_in + ci) * c_out + co] * xn
            # Three direct stores per channel (no lane-axis concatenate).
            o_ref[co, pl.ds(r0, rs), 0:wd] = (acc1 + b_co).astype(o_ref.dtype)
            o_ref[co, pl.ds(r0, rs), wd:2 * wd] = (acc2 + b_co).astype(o_ref.dtype)
            o_ref[co, pl.ds(r0, rs), (STRIDE_H - 1) * wd:] = (acc0 + b_co).astype(o_ref.dtype)
        return carry

    if n_sub == 1:
        sub_tile(0, 0)
    else:
        lax.fori_loop(0, n_sub, sub_tile, 0, unroll=n_sub <= 4)


def _vmem_capacity_bytes():
    try:
        return int(pltpu.get_tpu_info().vmem_capacity_bytes)
    except Exception:
        return 64 * 1024 * 1024      # conservative default (v7x per-core VMEM)


def _pick_block_rows(N, H, W, c_in, c_out, out_itemsize, in_itemsize, vmem_cap):
    """Input rows per grid step (th)."""
    if H <= 8:
        return H                     # single block spanning the whole height
    row_bytes = c_out * STRIDE_H * W * out_itemsize    # output bytes per input row
    th = int(_TARGET_OUT_BLOCK // row_bytes)
    th = max(8, min(256, (th // 8) * 8))
    th = min(th, ((H + 7) // 8) * 8)
    # VMEM: 2x-buffered output block + 2 inputs (x, x_next), each 2x-buffered.
    budget = max(2 * 1024 * 1024, vmem_cap // 3)       # generation-aware headroom
    while th > 8 and (2 * c_out * th * STRIDE_H * W * out_itemsize
                      + 4 * c_in * th * W * in_itemsize) > budget:
        th -= 8
    # Megacore (v7x: 2 TensorCores): keep at least 2 independent grid steps.
    if N * pl.cdiv(H, th) < 2:
        th = max(8, ((pl.cdiv(H, 2) + 7) // 8) * 8)
    return th


def upsample_deconv_padded(x, weight, bias, *, out_dtype=None, block_rows=None):
    """Crop-free form.

    Returns (out_rows, h_out) where out_rows has shape (N, C_out, HB*300, W),
    HB*300 >= h_out, and out_rows[:, :, :h_out, :] is the ConvTranspose2d
    result.  Rows are already in final coordinates (no leading pad row), so a
    consumer that can carry (buffer, h_out) avoids the crop copy entirely.
    """
    N, c_in, H, W = x.shape
    c_out = weight.shape[1]
    h_out = (H - 1) * STRIDE_H + 1
    sw = STRIDE_H * W
    out_dtype = jnp.dtype(x.dtype if out_dtype is None else out_dtype)

    vmem_cap = _vmem_capacity_bytes()
    th = block_rows if block_rows is not None else _pick_block_rows(
        N, H, W, c_in, c_out, out_dtype.itemsize, x.dtype.itemsize, vmem_cap)
    hb = pl.cdiv(H, th)
    h_pad = hb * th                                   # base rows covered (>= H)

    # Halo: +1-shifted copy of x (row i holds x[i+1], last row zero).  This is
    # ~1/300 of the output bytes -- negligible, and it lets every kernel store
    # land in final output coordinates with no leading pad row.
    x_next = jnp.concatenate([x[:, :, 1:, :], jnp.zeros_like(x[:, :, :1, :])], axis=2)

    # Weights (C_in, C_out, KH, 1) -> flat (KH, C_in, C_out) in SMEM.
    w_flat = jnp.transpose(weight[:, :, :, 0], (2, 0, 1)).reshape(-1).astype(jnp.float32)
    b_vec = bias.astype(jnp.float32)

    out_block = c_out * th * sw * out_dtype.itemsize
    in_block = c_in * th * W * x.dtype.itemsize
    vmem_limit = int(min(vmem_cap // 2, max(32 * 1024 * 1024, 3 * (out_block + 2 * in_block))))

    out_pad = pl.pallas_call(
        _deconv_kernel,
        out_shape=jax.ShapeDtypeStruct((N, c_out, h_pad, sw), out_dtype),
        grid_spec=pltpu.PrefetchScalarGridSpec(
            num_scalar_prefetch=0,
            grid=(N, hb),
            in_specs=[
                pl.BlockSpec(memory_space=pltpu.MemorySpace.SMEM),   # weights
                pl.BlockSpec(memory_space=pltpu.MemorySpace.SMEM),   # bias
                pl.BlockSpec((None, c_in, th, W), lambda n, i: (n, 0, i, 0)),  # x
                pl.BlockSpec((None, c_in, th, W), lambda n, i: (n, 0, i, 0)),  # x shifted
            ],
            out_specs=pl.BlockSpec((None, c_out, th, sw), lambda n, i: (n, 0, i, 0)),
        ),
        compiler_params=pltpu.CompilerParams(
            dimension_semantics=("parallel", "parallel"),
            vmem_limit_bytes=vmem_limit),
    )(w_flat, b_vec, x, x_next)

    # Contiguous (free) reshape: block rows are already final output rows.
    out_rows = out_pad.reshape(N, c_out, h_pad * STRIDE_H, W)
    return out_rows, h_out


def upsample_deconv(x, weight, bias, *, out_dtype=None, block_rows=None):
    """ConvTranspose2d(3,3,(3,1),stride=(300,1),padding=(1,0)) forward.

    x      : (N, C_in, H, W)  NCHW
    weight : (C_in, C_out, KH, 1)   (PyTorch ConvTranspose2d layout)
    bias   : (C_out,)
    returns: (N, C_out, H_out, W) with H_out = (H-1)*300 + 1
    """
    out_rows, h_out = upsample_deconv_padded(
        x, weight, bias, out_dtype=out_dtype, block_rows=block_rows)
    # The ONLY remaining copy: a trailing prefix slice to the exact PyTorch
    # shape.  Consumers that can carry (buffer, valid_len) should use
    # upsample_deconv_padded() and skip this.
    return out_rows[:, :, :h_out, :]


def _reference(xn, wn, bn):
    # Pure-numpy conv-transpose scatter reference.
    N, c_in, H, W = xn.shape
    c_out = wn.shape[1]
    h_out = (H - 1) * STRIDE_H + 1
    ref = np.broadcast_to(bn[None, :, None, None],
                          (N, c_out, h_out, W)).astype(np.float32)
    ref = np.array(ref)
    for kh in range(KH):
        for ih in range(H):
            oh = ih * STRIDE_H - PAD_H + kh
            if 0 <= oh < h_out:
                ref[:, :, oh, :] += np.einsum('ncw,co->now',
                                              xn[:, :, ih, :], wn[:, :, kh, 0])
    return ref


if __name__ == "__main__":
    key = jax.random.PRNGKey(0)
    k1, k2, k3 = jax.random.split(key, 3)

    c_in, c_out, W = 3, 3, 8
    # PyTorch ConvTranspose2d weight shape: (in_channels, out_channels, kH, kW)
    weight = jax.random.normal(k2, (c_in, c_out, KH, 1), jnp.float32) * 0.1
    bias = jax.random.normal(k3, (c_out,), jnp.float32) * 0.1

    # Case 1: small H (single row-block per batch element), N=2.
    N, H = 2, 4
    x = jax.random.normal(k1, (N, c_in, H, W), jnp.float32)
    out = jax.block_until_ready(upsample_deconv(x, weight, bias))
    h_out = (H - 1) * STRIDE_H + 1
    assert out.shape == (N, c_out, h_out, W)
    np.testing.assert_allclose(
        np.asarray(out),
        _reference(np.asarray(x), np.asarray(weight), np.asarray(bias)),
        rtol=1e-5, atol=1e-5)

    # Case 2: N=1, H=16 -> megacore split (2 row-blocks), halo crosses blocks.
    H2 = 16
    x2 = jax.random.normal(k1, (1, c_in, H2, W), jnp.float32)
    out2 = jax.block_until_ready(upsample_deconv(x2, weight, bias))
    np.testing.assert_allclose(
        np.asarray(out2),
        _reference(np.asarray(x2), np.asarray(weight), np.asarray(bias)),
        rtol=1e-5, atol=1e-5)

    # Case 3: H not a multiple of the row block (partial input block path).
    H3 = 12
    x3 = jax.random.normal(k1, (1, c_in, H3, W), jnp.float32)
    out3 = jax.block_until_ready(upsample_deconv(x3, weight, bias))
    np.testing.assert_allclose(
        np.asarray(out3),
        _reference(np.asarray(x3), np.asarray(weight), np.asarray(bias)),
        rtol=1e-5, atol=1e-5)

    print("KERNEL_OK")
</pallas_src>

<mosaic_0001>
module attributes {stable_mosaic.version = 11 : i64} {
  func.func @_deconv_kernel(%arg0: i32, %arg1: i32, %arg2: memref<27xf32, #tpu.memory_space<smem>>, %arg3: memref<3xf32, #tpu.memory_space<smem>>, %arg4: memref<1x3x4x8xf32, #tpu.memory_space<vmem>>, %arg5: memref<1x3x4x8xf32, #tpu.memory_space<vmem>>, %arg6: memref<1x3x4x2400xf32, #tpu.memory_space<vmem>>) attributes {dimension_semantics = [#tpu.dimension_semantics<parallel>, #tpu.dimension_semantics<parallel>], iteration_bounds = array<i64: 2, 1>, scalar_prefetch = 0 : i64, scratch_operands = 0 : i64, tpu.core_type = #tpu.core_type<tc>, window_params = [{transform_indices = @transform_0, window_bounds = array<i64: 27>}, {transform_indices = @transform_1, window_bounds = array<i64: 3>}, {transform_indices = @transform_2, window_bounds = array<i64: 1, 3, 4, 8>}, {transform_indices = @transform_3, window_bounds = array<i64: 1, 3, 4, 8>}, {transform_indices = @transform_4, window_bounds = array<i64: 1, 3, 4, 2400>}]} {
    %c0 = arith.constant 0 : index
    %0 = memref.load %arg3[%c0] : memref<3xf32, #tpu.memory_space<smem>>
    %1 = vector.broadcast %0 : f32 to vector<4x2400xf32>
    %c0_0 = arith.constant 0 : index
    %c0_1 = arith.constant 0 : index
    %c0_2 = arith.constant 0 : index
    %c0_3 = arith.constant 0 : index
    %2 = vector.load %arg6[%c0_0, %c0_1, %c0_2, %c0_3] : memref<1x3x4x2400xf32, #tpu.memory_space<vmem>>, vector<1x1x4x2400xf32>
    %3 = vector.shape_cast %2 : vector<1x1x4x2400xf32> to vector<4x2400xf32>
    %4 = vector.shape_cast %1 : vector<4x2400xf32> to vector<1x1x4x2400xf32>
    tpu.vector_store %arg6[%c0_0, %c0_1, %c0_2, %c0_3], %4 {strides = array<i32>} : memref<1x3x4x2400xf32, #tpu.memory_space<vmem>>, vector<1x1x4x2400xf32>,
    %c1 = arith.constant 1 : index
    %5 = memref.load %arg3[%c1] : memref<3xf32, #tpu.memory_space<smem>>
    %6 = vector.broadcast %5 : f32 to vector<4x2400xf32>
    %c0_4 = arith.constant 0 : index
    %c1_5 = arith.constant 1 : index
    %c0_6 = arith.constant 0 : index
    %c0_7 = arith.constant 0 : index
    %7 = vector.load %arg6[%c0_4, %c1_5, %c0_6, %c0_7] : memref<1x3x4x2400xf32, #tpu.memory_space<vmem>>, vector<1x1x4x2400xf32>
    %8 = vector.shape_cast %7 : vector<1x1x4x2400xf32> to vector<4x2400xf32>
    %9 = vector.shape_cast %6 : vector<4x2400xf32> to vector<1x1x4x2400xf32>
    tpu.vector_store %arg6[%c0_4, %c1_5, %c0_6, %c0_7], %9 {strides = array<i32>} : memref<1x3x4x2400xf32, #tpu.memory_space<vmem>>, vector<1x1x4x2400xf32>,
    %c2 = arith.constant 2 : index
    %10 = memref.load %arg3[%c2] : memref<3xf32, #tpu.memory_space<smem>>
    %11 = vector.broadcast %10 : f32 to vector<4x2400xf32>
    %c0_8 = arith.constant 0 : index
    %c2_9 = arith.constant 2 : index
    %c0_10 = arith.constant 0 : index
    %c0_11 = arith.constant 0 : index
    %12 = vector.load %arg6[%c0_8, %c2_9, %c0_10, %c0_11] : memref<1x3x4x2400xf32, #tpu.memory_space<vmem>>, vector<1x1x4x2400xf32>
    %13 = vector.shape_cast %12 : vector<1x1x4x2400xf32> to vector<4x2400xf32>
    %14 = vector.shape_cast %11 : vector<4x2400xf32> to vector<1x1x4x2400xf32>
    tpu.vector_store %arg6[%c0_8, %c2_9, %c0_10, %c0_11], %14 {strides = array<i32>} : memref<1x3x4x2400xf32, #tpu.memory_space<vmem>>, vector<1x1x4x2400xf32>,
    %c0_i32 = arith.constant 0 : i32
    %15 = tpu.assume_multiple %c0_i32, 4 : i32
    %c0_12 = arith.constant 0 : index
    %16 = memref.load %arg3[%c0_12] : memref<3xf32, #tpu.memory_space<smem>>
    %cst = arith.constant 0.000000e+00 : f32
    %17 = vector.broadcast %cst : f32 to vector<4x8xf32>
    %cst_13 = arith.constant 0.000000e+00 : f32
    %18 = vector.broadcast %cst_13 : f32 to vector<4x8xf32>
    %cst_14 = arith.constant 0.000000e+00 : f32
    %19 = vector.broadcast %cst_14 : f32 to vector<4x8xf32>
    %c0_15 = arith.constant 0 : index
    %c0_16 = arith.constant 0 : index
    %20 = arith.index_cast %15 : i32 to index
    %c0_17 = arith.constant 0 : index
    %21 = vector.load %arg4[%c0_15, %c0_16, %20, %c0_17] : memref<1x3x4x8xf32, #tpu.memory_space<vmem>>, vector<1x1x4x8xf32>
    %22 = vector.shape_cast %21 : vector<1x1x4x8xf32> to vector<4x8xf32>
    %c9 = arith.constant 9 : index
    %23 = memref.load %arg2[%c9] : memref<27xf32, #tpu.memory_space<smem>>
    %24 = vector.broadcast %23 : f32 to vector<4x8xf32>
    %25 = arith.mulf %24, %22 : vector<4x8xf32>
    %26 = arith.addf %17, %25 : vector<4x8xf32>
    %c18 = arith.constant 18 : index
    %27 = memref.load %arg2[%c18] : memref<27xf32, #tpu.memory_space<smem>>
    %28 = vector.broadcast %27 : f32 to vector<4x8xf32>
    %29 = arith.mulf %28, %22 : vector<4x8xf32>
    %30 = arith.addf %18, %29 : vector<4x8xf32>
    %c0_18 = arith.constant 0 : index
    %c0_19 = arith.constant 0 : index
    %31 = arith.index_cast %15 : i32 to index
    %c0_20 = arith.constant 0 : index
    %32 = vector.load %arg5[%c0_18, %c0_19, %31, %c0_20] : memref<1x3x4x8xf32, #tpu.memory_space<vmem>>, vector<1x1x4x8xf32>
    %33 = vector.shape_cast %32 : vector<1x1x4x8xf32> to vector<4x8xf32>
    %c0_21 = arith.constant 0 : index
    %34 = memref.load %arg2[%c0_21] : memref<27xf32, #tpu.memory_space<smem>>
    %35 = vector.broadcast %34 : f32 to vector<4x8xf32>
    %36 = arith.mulf %35, %33 : vector<4x8xf32>
    %37 = arith.addf %19, %36 : vector<4x8xf32>
    %c0_22 = arith.constant 0 : index
    %c1_23 = arith.constant 1 : index
    %38 = arith.index_cast %15 : i32 to index
    %c0_24 = arith.constant 0 : index
    %39 = vector.load %arg4[%c0_22, %c1_23, %38, %c0_24] : memref<1x3x4x8xf32, #tpu.memory_space<vmem>>, vector<1x1x4x8xf32>
    %40 = vector.shape_cast %39 : vector<1x1x4x8xf32> to vector<4x8xf32>
    %c12 = arith.constant 12 : index
    %41 = memref.load %arg2[%c12] : memref<27xf32, #tpu.memory_space<smem>>
    %42 = vector.broadcast %41 : f32 to vector<4x8xf32>
    %43 = arith.mulf %42, %40 : vector<4x8xf32>
    %44 = arith.addf %26, %43 : vector<4x8xf32>
    %c21 = arith.constant 21 : index
    %45 = memref.load %arg2[%c21] : memref<27xf32, #tpu.memory_space<smem>>
    %46 = vector.broadcast %45 : f32 to vector<4x8xf32>
    %47 = arith.mulf %46, %40 : vector<4x8xf32>
    %48 = arith.addf %30, %47 : vector<4x8xf32>
    %c0_25 = arith.constant 0 : index
    %c1_26 = arith.constant 1 : index
    %49 = arith.index_cast %15 : i32 to index
    %c0_27 = arith.constant 0 : index
    %50 = vector.load %arg5[%c0_25, %c1_26, %49, %c0_27] : memref<1x3x4x8xf32, #tpu.memory_space<vmem>>, vector<1x1x4x8xf32>
    %51 = vector.shape_cast %50 : vector<1x1x4x8xf32> to vector<4x8xf32>
    %c3 = arith.constant 3 : index
    %52 = memref.load %arg2[%c3] : memref<27xf32, #tpu.memory_space<smem>>
    %53 = vector.broadcast %52 : f32 to vector<4x8xf32>
    %54 = arith.mulf %53, %51 : vector<4x8xf32>
    %55 = arith.addf %37, %54 : vector<4x8xf32>
    %c0_28 = arith.constant 0 : index
    %c2_29 = arith.constant 2 : index
    %56 = arith.index_cast %15 : i32 to index
    %c0_30 = arith.constant 0 : index
    %57 = vector.load %arg4[%c0_28, %c2_29, %56, %c0_30] : memref<1x3x4x8xf32, #tpu.memory_space<vmem>>, vector<1x1x4x8xf32>
    %58 = vector.shape_cast %57 : vector<1x1x4x8xf32> to vector<4x8xf32>
    %c15 = arith.constant 15 : index
    %59 = memref.load %arg2[%c15] : memref<27xf32, #tpu.memory_space<smem>>
    %60 = vector.broadcast %59 : f32 to vector<4x8xf32>
    %61 = arith.mulf %60, %58 : vector<4x8xf32>
    %62 = arith.addf %44, %61 : vector<4x8xf32>
    %c24 = arith.constant 24 : index
    %63 = memref.load %arg2[%c24] : memref<27xf32, #tpu.memory_space<smem>>
    %64 = vector.broadcast %63 : f32 to vector<4x8xf32>
    %65 = arith.mulf %64, %58 : vector<4x8xf32>
    %66 = arith.addf %48, %65 : vector<4x8xf32>
    %c0_31 = arith.constant 0 : index
    %c2_32 = arith.constant 2 : index
    %67 = arith.index_cast %15 : i32 to index
    %c0_33 = arith.constant 0 : index
    %68 = vector.load %arg5[%c0_31, %c2_32, %67, %c0_33] : memref<1x3x4x8xf32, #tpu.memory_space<vmem>>, vector<1x1x4x8xf32>
    %69 = vector.shape_cast %68 : vector<1x1x4x8xf32> to vector<4x8xf32>
    %c6 = arith.constant 6 : index
    %70 = memref.load %arg2[%c6] : memref<27xf32, #tpu.memory_space<smem>>
    %71 = vector.broadcast %70 : f32 to vector<4x8xf32>
    %72 = arith.mulf %71, %69 : vector<4x8xf32>
    %73 = arith.addf %55, %72 : vector<4x8xf32>
    %74 = vector.broadcast %16 : f32 to vector<4x8xf32>
    %75 = arith.addf %62, %74 : vector<4x8xf32>
    %c0_34 = arith.constant 0 : index
    %c0_35 = arith.constant 0 : index
    %76 = arith.index_cast %15 : i32 to index
    %c0_36 = arith.constant 0 : index
    %77 = vector.load %arg6[%c0_34, %c0_35, %76, %c0_36] : memref<1x3x4x2400xf32, #tpu.memory_space<vmem>>, vector<1x1x4x8xf32>
    %78 = vector.shape_cast %77 : vector<1x1x4x8xf32> to vector<4x8xf32>
    %79 = vector.shape_cast %75 : vector<4x8xf32> to vector<1x1x4x8xf32>
    tpu.vector_store %arg6[%c0_34, %c0_35, %76, %c0_36], %79 {strides = array<i32>} : memref<1x3x4x2400xf32, #tpu.memory_space<vmem>>, vector<1x1x4x8xf32>,
    %80 = vector.broadcast %16 : f32 to vector<4x8xf32>
    %81 = arith.addf %66, %80 : vector<4x8xf32>
    %c0_37 = arith.constant 0 : index
    %c0_38 = arith.constant 0 : index
    %82 = arith.index_cast %15 : i32 to index
    %c8 = arith.constant 8 : index
    %83 = vector.load %arg6[%c0_37, %c0_38, %82, %c8] : memref<1x3x4x2400xf32, #tpu.memory_space<vmem>>, vector<1x1x4x8xf32>
    %84 = vector.shape_cast %83 : vector<1x1x4x8xf32> to vector<4x8xf32>
    %85 = vector.shape_cast %81 : vector<4x8xf32> to vector<1x1x4x8xf32>
    tpu.vector_store %arg6[%c0_37, %c0_38, %82, %c8], %85 {strides = array<i32>} : memref<1x3x4x2400xf32, #tpu.memory_space<vmem>>, vector<1x1x4x8xf32>,
    %86 = vector.broadcast %16 : f32 to vector<4x8xf32>
    %87 = arith.addf %73, %86 : vector<4x8xf32>
    %c0_39 = arith.constant 0 : index
    %c0_40 = arith.constant 0 : index
    %88 = arith.index_cast %15 : i32 to index
    %c2392 = arith.constant 2392 : index
    %89 = vector.load %arg6[%c0_39, %c0_40, %88, %c2392] : memref<1x3x4x2400xf32, #tpu.memory_space<vmem>>, vector<1x1x4x8xf32>
    %90 = vector.shape_cast %89 : vector<1x1x4x8xf32> to vector<4x8xf32>
    %91 = vector.shape_cast %87 : vector<4x8xf32> to vector<1x1x4x8xf32>
    tpu.vector_store %arg6[%c0_39, %c0_40, %88, %c2392], %91 {strides = array<i32>} : memref<1x3x4x2400xf32, #tpu.memory_space<vmem>>, vector<1x1x4x8xf32>,
    %c1_41 = arith.constant 1 : index
    %92 = memref.load %arg3[%c1_41] : memref<3xf32, #tpu.memory_space<smem>>
    %cst_42 = arith.constant 0.000000e+00 : f32
    %93 = vector.broadcast %cst_42 : f32 to vector<4x8xf32>
    %cst_43 = arith.constant 0.000000e+00 : f32
    %94 = vector.broadcast %cst_43 : f32 to vector<4x8xf32>
    %cst_44 = arith.constant 0.000000e+00 : f32
    %95 = vector.broadcast %cst_44 : f32 to vector<4x8xf32>
    %c0_45 = arith.constant 0 : index
    %c0_46 = arith.constant 0 : index
    %96 = arith.index_cast %15 : i32 to index
    %c0_47 = arith.constant 0 : index
    %97 = vector.load %arg4[%c0_45, %c0_46, %96, %c0_47] : memref<1x3x4x8xf32, #tpu.memory_space<vmem>>, vector<1x1x4x8xf32>
    %98 = vector.shape_cast %97 : vector<1x1x4x8xf32> to vector<4x8xf32>
    %c10 = arith.constant 10 : index
    %99 = memref.load %arg2[%c10] : memref<27xf32, #tpu.memory_space<smem>>
    %100 = vector.broadcast %99 : f32 to vector<4x8xf32>
    %101 = arith.mulf %100, %98 : vector<4x8xf32>
    %102 = arith.addf %93, %101 : vector<4x8xf32>
    %c19 = arith.constant 19 : index
    %103 = memref.load %arg2[%c19] : memref<27xf32, #tpu.memory_space<smem>>
    %104 = vector.broadcast %103 : f32 to vector<4x8xf32>
    %105 = arith.mulf %104, %98 : vector<4x8xf32>
    %106 = arith.addf %94, %105 : vector<4x8xf32>
    %c0_48 = arith.constant 0 : index
    %c0_49 = arith.constant 0 : index
    %107 = arith.index_cast %15 : i32 to index
    %c0_50 = arith.constant 0 : index
    %108 = vector.load %arg5[%c0_48, %c0_49, %107, %c0_50] : memref<1x3x4x8xf32, #tpu.memory_space<vmem>>, vector<1x1x4x8xf32>
    %109 = vector.shape_cast %108 : vector<1x1x4x8xf32> to vector<4x8xf32>
    %c1_51 = arith.constant 1 : index
    %110 = memref.load %arg2[%c1_51] : memref<27xf32, #tpu.memory_space<smem>>
    %111 = vector.broadcast %110 : f32 to vector<4x8xf32>
    %112 = arith.mulf %111, %109 : vector<4x8xf32>
    %113 = arith.addf %95, %112 : vector<4x8xf32>
    %c0_52 = arith.constant 0 : index
    %c1_53 = arith.constant 1 : index
    %114 = arith.index_cast %15 : i32 to index
    %c0_54 = arith.constant 0 : index
    %115 = vector.load %arg4[%c0_52, %c1_53, %114, %c0_54] : memref<1x3x4x8xf32, #tpu.memory_space<vmem>>, vector<1x1x4x8xf32>
    %116 = vector.shape_cast %115 : vector<1x1x4x8xf32> to vector<4x8xf32>
    %c13 = arith.constant 13 : index
    %117 = memref.load %arg2[%c13] : memref<27xf32, #tpu.memory_space<smem>>
    %118 = vector.broadcast %117 : f32 to vector<4x8xf32>
    %119 = arith.mulf %118, %116 : vector<4x8xf32>
    %120 = arith.addf %102, %119 : vector<4x8xf32>
    %c22 = arith.constant 22 : index
    %121 = memref.load %arg2[%c22] : memref<27xf32, #tpu.memory_space<smem>>
    %122 = vector.broadcast %121 : f32 to vector<4x8xf32>
    %123 = arith.mulf %122, %116 : vector<4x8xf32>
    %124 = arith.addf %106, %123 : vector<4x8xf32>
    %c0_55 = arith.constant 0 : index
    %c1_56 = arith.constant 1 : index
    %125 = arith.index_cast %15 : i32 to index
    %c0_57 = arith.constant 0 : index
    %126 = vector.load %arg5[%c0_55, %c1_56, %125, %c0_57] : memref<1x3x4x8xf32, #tpu.memory_space<vmem>>, vector<1x1x4x8xf32>
    %127 = vector.shape_cast %126 : vector<1x1x4x8xf32> to vector<4x8xf32>
    %c4 = arith.constant 4 : index
    %128 = memref.load %arg2[%c4] : memref<27xf32, #tpu.memory_space<smem>>
    %129 = vector.broadcast %128 : f32 to vector<4x8xf32>
    %130 = arith.mulf %129, %127 : vector<4x8xf32>
    %131 = arith.addf %113, %130 : vector<4x8xf32>
    %c0_58 = arith.constant 0 : index
    %c2_59 = arith.constant 2 : index
    %132 = arith.index_cast %15 : i32 to index
    %c0_60 = arith.constant 0 : index
    %133 = vector.load %arg4[%c0_58, %c2_59, %132, %c0_60] : memref<1x3x4x8xf32, #tpu.memory_space<vmem>>, vector<1x1x4x8xf32>
    %134 = vector.shape_cast %133 : vector<1x1x4x8xf32> to vector<4x8xf32>
    %c16 = arith.constant 16 : index
    %135 = memref.load %arg2[%c16] : memref<27xf32, #tpu.memory_space<smem>>
    %136 = vector.broadcast %135 : f32 to vector<4x8xf32>
    %137 = arith.mulf %136, %134 : vector<4x8xf32>
    %138 = arith.addf %120, %137 : vector<4x8xf32>
    %c25 = arith.constant 25 : index
    %139 = memref.load %arg2[%c25] : memref<27xf32, #tpu.memory_space<smem>>
    %140 = vector.broadcast %139 : f32 to vector<4x8xf32>
    %141 = arith.mulf %140, %134 : vector<4x8xf32>
    %142 = arith.addf %124, %141 : vector<4x8xf32>
    %c0_61 = arith.constant 0 : index
    %c2_62 = arith.constant 2 : index
    %143 = arith.index_cast %15 : i32 to index
    %c0_63 = arith.constant 0 : index
    %144 = vector.load %arg5[%c0_61, %c2_62, %143, %c0_63] : memref<1x3x4x8xf32, #tpu.memory_space<vmem>>, vector<1x1x4x8xf32>
    %145 = vector.shape_cast %144 : vector<1x1x4x8xf32> to vector<4x8xf32>
    %c7 = arith.constant 7 : index
    %146 = memref.load %arg2[%c7] : memref<27xf32, #tpu.memory_space<smem>>
    %147 = vector.broadcast %146 : f32 to vector<4x8xf32>
    %148 = arith.mulf %147, %145 : vector<4x8xf32>
    %149 = arith.addf %131, %148 : vector<4x8xf32>
    %150 = vector.broadcast %92 : f32 to vector<4x8xf32>
    %151 = arith.addf %138, %150 : vector<4x8xf32>
    %c0_64 = arith.constant 0 : index
    %c1_65 = arith.constant 1 : index
    %152 = arith.index_cast %15 : i32 to index
    %c0_66 = arith.constant 0 : index
    %153 = vector.load %arg6[%c0_64, %c1_65, %152, %c0_66] : memref<1x3x4x2400xf32, #tpu.memory_space<vmem>>, vector<1x1x4x8xf32>
    %154 = vector.shape_cast %153 : vector<1x1x4x8xf32> to vector<4x8xf32>
    %155 = vector.shape_cast %151 : vector<4x8xf32> to vector<1x1x4x8xf32>
    tpu.vector_store %arg6[%c0_64, %c1_65, %152, %c0_66], %155 {strides = array<i32>} : memref<1x3x4x2400xf32, #tpu.memory_space<vmem>>, vector<1x1x4x8xf32>,
    %156 = vector.broadcast %92 : f32 to vector<4x8xf32>
    %157 = arith.addf %142, %156 : vector<4x8xf32>
    %c0_67 = arith.constant 0 : index
    %c1_68 = arith.constant 1 : index
    %158 = arith.index_cast %15 : i32 to index
    %c8_69 = arith.constant 8 : index
    %159 = vector.load %arg6[%c0_67, %c1_68, %158, %c8_69] : memref<1x3x4x2400xf32, #tpu.memory_space<vmem>>, vector<1x1x4x8xf32>
    %160 = vector.shape_cast %159 : vector<1x1x4x8xf32> to vector<4x8xf32>
    %161 = vector.shape_cast %157 : vector<4x8xf32> to vector<1x1x4x8xf32>
    tpu.vector_store %arg6[%c0_67, %c1_68, %158, %c8_69], %161 {strides = array<i32>} : memref<1x3x4x2400xf32, #tpu.memory_space<vmem>>, vector<1x1x4x8xf32>,
    %162 = vector.broadcast %92 : f32 to vector<4x8xf32>
    %163 = arith.addf %149, %162 : vector<4x8xf32>
    %c0_70 = arith.constant 0 : index
    %c1_71 = arith.constant 1 : index
    %164 = arith.index_cast %15 : i32 to index
    %c2392_72 = arith.constant 2392 : index
    %165 = vector.load %arg6[%c0_70, %c1_71, %164, %c2392_72] : memref<1x3x4x2400xf32, #tpu.memory_space<vmem>>, vector<1x1x4x8xf32>
    %166 = vector.shape_cast %165 : vector<1x1x4x8xf32> to vector<4x8xf32>
    %167 = vector.shape_cast %163 : vector<4x8xf32> to vector<1x1x4x8xf32>
    tpu.vector_store %arg6[%c0_70, %c1_71, %164, %c2392_72], %167 {strides = array<i32>} : memref<1x3x4x2400xf32, #tpu.memory_space<vmem>>, vector<1x1x4x8xf32>,
    %c2_73 = arith.constant 2 : index
    %168 = memref.load %arg3[%c2_73] : memref<3xf32, #tpu.memory_space<smem>>
    %cst_74 = arith.constant 0.000000e+00 : f32
    %169 = vector.broadcast %cst_74 : f32 to vector<4x8xf32>
    %cst_75 = arith.constant 0.000000e+00 : f32
    %170 = vector.broadcast %cst_75 : f32 to vector<4x8xf32>
    %cst_76 = arith.constant 0.000000e+00 : f32
    %171 = vector.broadcast %cst_76 : f32 to vector<4x8xf32>
    %c0_77 = arith.constant 0 : index
    %c0_78 = arith.constant 0 : index
    %172 = arith.index_cast %15 : i32 to index
    %c0_79 = arith.constant 0 : index
    %173 = vector.load %arg4[%c0_77, %c0_78, %172, %c0_79] : memref<1x3x4x8xf32, #tpu.memory_space<vmem>>, vector<1x1x4x8xf32>
    %174 = vector.shape_cast %173 : vector<1x1x4x8xf32> to vector<4x8xf32>
    %c11 = arith.constant 11 : index
    %175 = memref.load %arg2[%c11] : memref<27xf32, #tpu.memory_space<smem>>
    %176 = vector.broadcast %175 : f32 to vector<4x8xf32>
    %177 = arith.mulf %176, %174 : vector<4x8xf32>
    %178 = arith.addf %169, %177 : vector<4x8xf32>
    %c20 = arith.constant 20 : index
    %179 = memref.load %arg2[%c20] : memref<27xf32, #tpu.memory_space<smem>>
    %180 = vector.broadcast %179 : f32 to vector<4x8xf32>
    %181 = arith.mulf %180, %174 : vector<4x8xf32>
    %182 = arith.addf %170, %181 : vector<4x8xf32>
    %c0_80 = arith.constant 0 : index
    %c0_81 = arith.constant 0 : index
    %183 = arith.index_cast %15 : i32 to index
    %c0_82 = arith.constant 0 : index
    %184 = vector.load %arg5[%c0_80, %c0_81, %183, %c0_82] : memref<1x3x4x8xf32, #tpu.memory_space<vmem>>, vector<1x1x4x8xf32>
    %185 = vector.shape_cast %184 : vector<1x1x4x8xf32> to vector<4x8xf32>
    %c2_83 = arith.constant 2 : index
    %186 = memref.load %arg2[%c2_83] : memref<27xf32, #tpu.memory_space<smem>>
    %187 = vector.broadcast %186 : f32 to vector<4x8xf32>
    %188 = arith.mulf %187, %185 : vector<4x8xf32>
    %189 = arith.addf %171, %188 : vector<4x8xf32>
    %c0_84 = arith.constant 0 : index
    %c1_85 = arith.constant 1 : index
    %190 = arith.index_cast %15 : i32 to index
    %c0_86 = arith.constant 0 : index
    %191 = vector.load %arg4[%c0_84, %c1_85, %190, %c0_86] : memref<1x3x4x8xf32, #tpu.memory_space<vmem>>, vector<1x1x4x8xf32>
    %192 = vector.shape_cast %191 : vector<1x1x4x8xf32> to vector<4x8xf32>
    %c14 = arith.constant 14 : index
    %193 = memref.load %arg2[%c14] : memref<27xf32, #tpu.memory_space<smem>>
    %194 = vector.broadcast %193 : f32 to vector<4x8xf32>
    %195 = arith.mulf %194, %192 : vector<4x8xf32>
    %196 = arith.addf %178, %195 : vector<4x8xf32>
    %c23 = arith.constant 23 : index
    %197 = memref.load %arg2[%c23] : memref<27xf32, #tpu.memory_space<smem>>
    %198 = vector.broadcast %197 : f32 to vector<4x8xf32>
    %199 = arith.mulf %198, %192 : vector<4x8xf32>
    %200 = arith.addf %182, %199 : vector<4x8xf32>
    %c0_87 = arith.constant 0 : index
    %c1_88 = arith.constant 1 : index
    %201 = arith.index_cast %15 : i32 to index
    %c0_89 = arith.constant 0 : index
    %202 = vector.load %arg5[%c0_87, %c1_88, %201, %c0_89] : memref<1x3x4x8xf32, #tpu.memory_space<vmem>>, vector<1x1x4x8xf32>
    %203 = vector.shape_cast %202 : vector<1x1x4x8xf32> to vector<4x8xf32>
    %c5 = arith.constant 5 : index
    %204 = memref.load %arg2[%c5] : memref<27xf32, #tpu.memory_space<smem>>
    %205 = vector.broadcast %204 : f32 to vector<4x8xf32>
    %206 = arith.mulf %205, %203 : vector<4x8xf32>
    %207 = arith.addf %189, %206 : vector<4x8xf32>
    %c0_90 = arith.constant 0 : index
    %c2_91 = arith.constant 2 : index
    %208 = arith.index_cast %15 : i32 to index
    %c0_92 = arith.constant 0 : index
    %209 = vector.load %arg4[%c0_90, %c2_91, %208, %c0_92] : memref<1x3x4x8xf32, #tpu.memory_space<vmem>>, vector<1x1x4x8xf32>
    %210 = vector.shape_cast %209 : vector<1x1x4x8xf32> to vector<4x8xf32>
    %c17 = arith.constant 17 : index
    %211 = memref.load %arg2[%c17] : memref<27xf32, #tpu.memory_space<smem>>
    %212 = vector.broadcast %211 : f32 to vector<4x8xf32>
    %213 = arith.mulf %212, %210 : vector<4x8xf32>
    %214 = arith.addf %196, %213 : vector<4x8xf32>
    %c26 = arith.constant 26 : index
    %215 = memref.load %arg2[%c26] : memref<27xf32, #tpu.memory_space<smem>>
    %216 = vector.broadcast %215 : f32 to vector<4x8xf32>
    %217 = arith.mulf %216, %210 : vector<4x8xf32>
    %218 = arith.addf %200, %217 : vector<4x8xf32>
    %c0_93 = arith.constant 0 : index
    %c2_94 = arith.constant 2 : index
    %219 = arith.index_cast %15 : i32 to index
    %c0_95 = arith.constant 0 : index
    %220 = vector.load %arg5[%c0_93, %c2_94, %219, %c0_95] : memref<1x3x4x8xf32, #tpu.memory_space<vmem>>, vector<1x1x4x8xf32>
    %221 = vector.shape_cast %220 : vector<1x1x4x8xf32> to vector<4x8xf32>
    %c8_96 = arith.constant 8 : index
    %222 = memref.load %arg2[%c8_96] : memref<27xf32, #tpu.memory_space<smem>>
    %223 = vector.broadcast %222 : f32 to vector<4x8xf32>
    %224 = arith.mulf %223, %221 : vector<4x8xf32>
    %225 = arith.addf %207, %224 : vector<4x8xf32>
    %226 = vector.broadcast %168 : f32 to vector<4x8xf32>
    %227 = arith.addf %214, %226 : vector<4x8xf32>
    %c0_97 = arith.constant 0 : index
    %c2_98 = arith.constant 2 : index
    %228 = arith.index_cast %15 : i32 to index
    %c0_99 = arith.constant 0 : index
    %229 = vector.load %arg6[%c0_97, %c2_98, %228, %c0_99] : memref<1x3x4x2400xf32, #tpu.memory_space<vmem>>, vector<1x1x4x8xf32>
    %230 = vector.shape_cast %229 : vector<1x1x4x8xf32> to vector<4x8xf32>
    %231 = vector.shape_cast %227 : vector<4x8xf32> to vector<1x1x4x8xf32>
    tpu.vector_store %arg6[%c0_97, %c2_98, %228, %c0_99], %231 {strides = array<i32>} : memref<1x3x4x2400xf32, #tpu.memory_space<vmem>>, vector<1x1x4x8xf32>,
    %232 = vector.broadcast %168 : f32 to vector<4x8xf32>
    %233 = arith.addf %218, %232 : vector<4x8xf32>
    %c0_100 = arith.constant 0 : index
    %c2_101 = arith.constant 2 : index
    %234 = arith.index_cast %15 : i32 to index
    %c8_102 = arith.constant 8 : index
    %235 = vector.load %arg6[%c0_100, %c2_101, %234, %c8_102] : memref<1x3x4x2400xf32, #tpu.memory_space<vmem>>, vector<1x1x4x8xf32>
    %236 = vector.shape_cast %235 : vector<1x1x4x8xf32> to vector<4x8xf32>
    %237 = vector.shape_cast %233 : vector<4x8xf32> to vector<1x1x4x8xf32>
    tpu.vector_store %arg6[%c0_100, %c2_101, %234, %c8_102], %237 {strides = array<i32>} : memref<1x3x4x2400xf32, #tpu.memory_space<vmem>>, vector<1x1x4x8xf32>,
    %238 = vector.broadcast %168 : f32 to vector<4x8xf32>
    %239 = arith.addf %225, %238 : vector<4x8xf32>
    %c0_103 = arith.constant 0 : index
    %c2_104 = arith.constant 2 : index
    %240 = arith.index_cast %15 : i32 to index
    %c2392_105 = arith.constant 2392 : index
    %241 = vector.load %arg6[%c0_103, %c2_104, %240, %c2392_105] : memref<1x3x4x2400xf32, #tpu.memory_space<vmem>>, vector<1x1x4x8xf32>
    %242 = vector.shape_cast %241 : vector<1x1x4x8xf32> to vector<4x8xf32>
    %243 = vector.shape_cast %239 : vector<4x8xf32> to vector<1x1x4x8xf32>
    tpu.vector_store %arg6[%c0_103, %c2_104, %240, %c2392_105], %243 {strides = array<i32>} : memref<1x3x4x2400xf32, #tpu.memory_space<vmem>>, vector<1x1x4x8xf32>,
    return
  }
  func.func @transform_0(%arg0: i32, %arg1: i32) -> i32 {
    %c0_i32 = arith.constant 0 : i32
    %c0_i32_0 = arith.constant 0 : i32
    return %c0_i32 : i32
  }
  func.func @transform_1(%arg0: i32, %arg1: i32) -> i32 {
    %c0_i32 = arith.constant 0 : i32
    %c0_i32_0 = arith.constant 0 : i32
    return %c0_i32 : i32
  }
  func.func @transform_2(%arg0: i32, %arg1: i32) -> (i32, i32, i32, i32) {
    %c0_i32 = arith.constant 0 : i32
    %c0_i32_0 = arith.constant 0 : i32
    %c0_i32_1 = arith.constant 0 : i32
    return %arg0, %c0_i32, %arg1, %c0_i32_0 : i32, i32, i32, i32
  }
  func.func @transform_3(%arg0: i32, %arg1: i32) -> (i32, i32, i32, i32) {
    %c0_i32 = arith.constant 0 : i32
    %c0_i32_0 = arith.constant 0 : i32
    %c0_i32_1 = arith.constant 0 : i32
    return %arg0, %c0_i32, %arg1, %c0_i32_0 : i32, i32, i32, i32
  }
  func.func @transform_4(%arg0: i32, %arg1: i32) -> (i32, i32, i32, i32) {
    %c0_i32 = arith.constant 0 : i32
    %c0_i32_0 = arith.constant 0 : i32
    %c0_i32_1 = arith.constant 0 : i32
    return %arg0, %c0_i32, %arg1, %c0_i32_0 : i32, i32, i32, i32
  }
}

</mosaic_0001>

<llo_original>
// kernel: tpu_custom_call.1
$region0: #{tpu_custom_call.1}
  #allocation0 [shape = 'u32[]', space=smem, size = 0x4, offset = 0x4, fixed_abs, tag = 'smem constant byte address 0x4 - core index']
  #allocation1 [shape = 'u32[144,128]{1,0:T(1,128)}', space=vmem, size = 0x12000, scoped, tag = 'internal scratch']
  %s0 = inlined_call_operand.hbm [shape: f32[27], index: 0, kind: input, shape index: {}]
  %s1 = inlined_call_operand.vmem [shape: f32[3], index: 1, kind: input, shape index: {}]
  %s2 = inlined_call_operand.hbm [shape: f32[2,3,4,8], index: 2, kind: input, shape index: {}]
  %s3 = inlined_call_operand.hbm [shape: f32[2,3,4,8], index: 3, kind: input, shape index: {}]
  %s4 = inlined_call_operand.hbm [shape: f32[2,3,4,2400], index: 4, kind: output, shape index: {}]
  %s5 = sld [smem:[#allocation0]]
  $region65: #{tpu_custom_call.1} parent=0
    _
  %s7 = ssub.s32 1, %s5
  %s8 = scalar_select 0, %s7, %s5
  $region1: #{tpu_custom_call.1} parent=0
    #allocation2 [shape = 'u8[512]{0}', space=smem, size = 0x200, scoped, tag = 'input window, operand 0, single buffered']
    #allocation3 [shape = 's32[2]{0}', space=sflag, size = 0x8, scoped, tag = 'scoped memory for tpu_custom_call.1']
    #allocation4 [shape = 's32[2]{0}', space=sflag, size = 0x8, scoped, tag = 'scoped memory for tpu_custom_call.1']
    #allocation5 [shape = 's32[2]{0}', space=sflag, size = 0x8, scoped, tag = 'scoped memory for tpu_custom_call.1']
    #allocation6 [shape = 's32[2]{0}', space=sflag, size = 0x8, scoped, tag = 'scoped memory for tpu_custom_call.1']
    #allocation7 [shape = 'u8[512]{0}', space=smem, size = 0x200, scoped, tag = 'input window, operand 1, single buffered']
    #allocation8 [shape = 'u8[12288]{0}', space=vmem, size = 0x3000, scoped, tag = 'input window, operand 2']
    #allocation9 [shape = 'u8[12288]{0}', space=vmem, size = 0x3000, scoped, tag = 'input window, operand 3']
    #allocation10 [shape = 's32[2]{0}', space=sflag, size = 0x8, scoped, tag = 'scoped memory for tpu_custom_call.1']
    #allocation11 [shape = 'u8[233472]{0}', space=vmem, size = 0x39000, scoped, tag = 'output window, operand 0']
    %9 = vsyncpa [#allocation5], 0
    %10 = vsyncpa [#allocation6], 0
    %11 = vsyncpa [#allocation3], 0
    %s12 = scalar_lea.sflag [#allocation3], 1
    %13 = vsyncpa %s12, 0
    %14 = vsyncpa [#allocation10], 0
    %s15 = scalar_lea.sflag [#allocation10], 1
    %16 = vsyncpa %s15, 0
    %17 = vsyncpa [#allocation4], 0
    %s18 = scalar_lea.sflag [#allocation4], 1
    %19 = vsyncpa %s18, 0
    loop: start=0, step=1, limit=4
    $region2: #{tpu_custom_call.1} parent=1 // loop_pre_header
      _
    $region3: #{tpu_custom_call.1} parent=1 // loop_header
      %s21 = sphi 0, %s25
      %p22 = scmp.ge.s32.totalorder %s21, 4
      %s28 = sphi 0, %s40
      %s29 = sphi 0, %s36
      %s30 = sphi 0, %s28
      %s31 = sphi 0, %s29
      %s32 = sphi 0, %s30
      %s33 = sphi 0, %s31
      %s41 = sphi 0, %s41
      %s43 = sphi 0, %s41
      %s44 = sphi 0, %s43
      %s58 = sphi 0, %s44
      %s62 = sphi 0, %s62
      %s64 = sphi 0, %s62
      %s65 = sphi 0, %s64
      %s79 = sphi 0, %s65
      %s87 = sphi 0, %s89
      %s90 = sphi 0, %s87
      %s91 = sphi 0, %s90
      %s107 = sphi 0, %s91
      %s115 = sphi 0, %s117
      %s118 = sphi 0, %s115
      %s119 = sphi 0, %s118
      %s135 = sphi 0, %s119
      %s143 = sphi 0, %s145
      %s146 = sphi 0, %s143
      %s147 = sphi 0, %s146
      %s163 = sphi 0, %s147
    $region4: #{tpu_custom_call.1} parent=1 // loop_header_branch
      %24 = sbr.rel (%p22) target = $region8
    $region5: #{tpu_custom_call.1} parent=1 // loop_body
      %s26 = ssub.s32 %s21, 1
      %s27 = ssub.s32 %s21, 2
      %s34 = sadd.s32 1, %s29
      %p35 = scmp.ge.s32.totalorder %s34, 1
      %s36 = scalar_select %p35, 0, %s34
      %s37 = sadd.s32 1, %s28
      %s38 = scalar_select %p35, %s37, %s28
      %p39 = scmp.ge.s32.totalorder %s38, 2
      %s40 = scalar_select %p39, 0, %s38
      %s42 = sadd.s32 %s41, 1
      %p45 = scmp.eq.s32.totalorder %s21, 1
      %p46 = scmp.ne.s32.totalorder %s41, %s43
      %p47 = scmp.eq.s32.totalorder %s21, 0
      %p48 = por %p46, %p47
      %p49 = scmp.ne.s32.totalorder %s41, %s43
      %p50 = scmp.eq.s32.totalorder %s26, 1
      %p51 = por %p49, %p50
      %p52 = scmp.ne.s32.totalorder %s43, %s44
      %p53 = scmp.eq.s32.totalorder %s26, 0
      %p54 = por %p52, %p53
      %p55 = scmp.ne.s32.totalorder %s43, %s44
      %p56 = scmp.eq.s32.totalorder %s27, 1
      %p57 = por %p55, %p56
      %p59 = scmp.ne.s32.totalorder %s44, %s58
      %p60 = scmp.eq.s32.totalorder %s27, 0
      %p61 = por %p59, %p60
      %s63 = sadd.s32 %s62, 1
      %p66 = scmp.eq.s32.totalorder %s21, 1
      %p67 = scmp.ne.s32.totalorder %s62, %s64
      %p68 = scmp.eq.s32.totalorder %s21, 0
      %p69 = por %p67, %p68
      %p70 = scmp.ne.s32.totalorder %s62, %s64
      %p71 = scmp.eq.s32.totalorder %s26, 1
      %p72 = por %p70, %p71
      %p73 = scmp.ne.s32.totalorder %s64, %s65
      %p74 = scmp.eq.s32.totalorder %s26, 0
      %p75 = por %p73, %p74
      %p76 = scmp.ne.s32.totalorder %s64, %s65
      %p77 = scmp.eq.s32.totalorder %s27, 1
      %p78 = por %p76, %p77
      %p80 = scmp.ne.s32.totalorder %s65, %s79
      %p81 = scmp.eq.s32.totalorder %s27, 0
      %p82 = por %p80, %p81
      %s83 = ssub.s32 %s28, %s40
      %s84 = ssub.s32 %s29, %s36
      %s85 = sor.u32 %s83, %s84
      %p86 = scmp.eq.s32.totalorder %s85, 0
      %s88 = sadd.s32 %s87, 1
      %s89 = scalar_select %p86, %s87, %s88
      %p92 = pneg %p86
      %p93 = scmp.eq.s32.totalorder %s21, 1
      %p94 = por %p92, %p93
      %p95 = scmp.ne.s32.totalorder %s87, %s90
      %p96 = scmp.eq.s32.totalorder %s21, 0
      %p97 = por %p95, %p96
      %p98 = scmp.ne.s32.totalorder %s87, %s90
      %p99 = scmp.eq.s32.totalorder %s26, 1
      %p100 = por %p98, %p99
      %p101 = scmp.ne.s32.totalorder %s90, %s91
      %p102 = scmp.eq.s32.totalorder %s26, 0
      %p103 = por %p101, %p102
      %p104 = scmp.ne.s32.totalorder %s90, %s91
      %p105 = scmp.eq.s32.totalorder %s27, 1
      %p106 = por %p104, %p105
      %p108 = scmp.ne.s32.totalorder %s91, %s107
      %p109 = scmp.eq.s32.totalorder %s27, 0
      %p110 = por %p108, %p109
      %s111 = ssub.s32 %s28, %s40
      %s112 = ssub.s32 %s29, %s36
      %s113 = sor.u32 %s111, %s112
      %p114 = scmp.eq.s32.totalorder %s113, 0
      %s116 = sadd.s32 %s115, 1
      %s117 = scalar_select %p114, %s115, %s116
      %p120 = pneg %p114
      %p121 = scmp.eq.s32.totalorder %s21, 1
      %p122 = por %p120, %p121
      %p123 = scmp.ne.s32.totalorder %s115, %s118
      %p124 = scmp.eq.s32.totalorder %s21, 0
      %p125 = por %p123, %p124
      %p126 = scmp.ne.s32.totalorder %s115, %s118
      %p127 = scmp.eq.s32.totalorder %s26, 1
      %p128 = por %p126, %p127
      %p129 = scmp.ne.s32.totalorder %s118, %s119
      %p130 = scmp.eq.s32.totalorder %s26, 0
      %p131 = por %p129, %p130
      %p132 = scmp.ne.s32.totalorder %s118, %s119
      %p133 = scmp.eq.s32.totalorder %s27, 1
      %p134 = por %p132, %p133
      %p136 = scmp.ne.s32.totalorder %s119, %s135
      %p137 = scmp.eq.s32.totalorder %s27, 0
      %p138 = por %p136, %p137
      %s139 = ssub.s32 %s28, %s40
      %s140 = ssub.s32 %s29, %s36
      %s141 = sor.u32 %s139, %s140
      %p142 = scmp.eq.s32.totalorder %s141, 0
      %s144 = sadd.s32 %s143, 1
      %s145 = scalar_select %p142, %s143, %s144
      %p148 = pneg %p142
      %p149 = scmp.eq.s32.totalorder %s21, 1
      %p150 = por %p148, %p149
      %p151 = scmp.ne.s32.totalorder %s143, %s146
      %p152 = scmp.eq.s32.totalorder %s21, 0
      %p153 = por %p151, %p152
      %p154 = scmp.ne.s32.totalorder %s143, %s146
      %p155 = scmp.eq.s32.totalorder %s26, 1
      %p156 = por %p154, %p155
      %p157 = scmp.ne.s32.totalorder %s146, %s147
      %p158 = scmp.eq.s32.totalorder %s26, 0
      %p159 = por %p157, %p158
      %p160 = scmp.ne.s32.totalorder %s146, %s147
      %p161 = scmp.eq.s32.totalorder %s27, 1
      %p162 = por %p160, %p161
      %p164 = scmp.ne.s32.totalorder %s147, %s163
      %p165 = scmp.eq.s32.totalorder %s27, 0
      %p166 = por %p164, %p165
      %p167 = scmp.le.s32.totalorder 1, %s21
      %p168 = scmp.lt.s32.totalorder %s21, 3
      %p169 = pnand %p167, %p168
      %p170 = pneg %p169
      // Predicated region
      $region9: #{tpu_custom_call.1} parent=5 // pred_check
        _
      $region10: #{tpu_custom_call.1} parent=5 // pred_check_branch
        %172 = sbr.rel (%p169) target = $region12
      $region11: #{tpu_custom_call.1} parent=5 // pred_region
        %s173 = ssub.s32 %s21, 1
        // Predicated region
        $region13: #{tpu_custom_call.1} parent=11 // pred_check
          %p174 = pneg %p54
        $region14: #{tpu_custom_call.1} parent=11 // pred_check_branch
          %176 = sbr.rel (%p174) target = $region16
        $region15: #{tpu_custom_call.1} parent=11 // pred_region
          %s178 = ssub.s32 16, 16
          %179 = vsyncadd [#allocation5], %s178
          %182 = dma.hbm_to_smem %s0, 16, [#allocation2], [#allocation5]
        $region16: #{tpu_custom_call.1} parent=11 // pred_fallthru
          _
        // Predicated region
        $region17: #{tpu_custom_call.1} parent=11 // pred_check
          %p183 = pneg %p75
        $region18: #{tpu_custom_call.1} parent=11 // pred_check_branch
          %185 = sbr.rel (%p183) target = $region20
        $region19: #{tpu_custom_call.1} parent=11 // pred_region
          %s187 = ssub.s32 16, 16
          %188 = vsyncadd [#allocation6], %s187
          %s190 = sshll.u32 %s1, 4
          %s191 = int_to_ptr.vmem [resolvable:$true] %s190
          %193 = dma.vmem_to_smem %s191, 16, [#allocation7], [#allocation6]
        $region20: #{tpu_custom_call.1} parent=11 // pred_fallthru
          _
      $region12: #{tpu_custom_call.1} parent=5 // pred_fallthru
        _
      %p194 = scmp.lt.s32.totalorder %s21, 2
      // Predicated region
      $region21: #{tpu_custom_call.1} parent=5 // pred_check
        %p195 = pneg %p194
      $region22: #{tpu_custom_call.1} parent=5 // pred_check_branch
        %197 = sbr.rel (%p195) target = $region24
      $region23: #{tpu_custom_call.1} parent=5 // pred_region
        // Predicated region
        $region25: #{tpu_custom_call.1} parent=23 // pred_check
          %p198 = pneg %p97
        $region26: #{tpu_custom_call.1} parent=23 // pred_check_branch
          %200 = sbr.rel (%p198) target = $region28
        $region27: #{tpu_custom_call.1} parent=23 // pred_region
          %s201 = sand.u32 %s87, 1
          %s202 = scalar_lea.sflag [#allocation3], %s201
          %s203 = sand.u32 %s87, 1
          %s204 = smul.addr %s203, 12
          %s205 = scalar_lea.vmem [#allocation8], %s204
          %s207 = ssub.s32 192, 192
          %208 = vsyncadd %s202, %s207
          %s209 = smul.addr %s28, 3
          %s210 = sadd.s32 %s29, %s209
          %s211 = smul.addr %s210, 64
          %s212 = scalar_lea.hbm %s2, %s211
          %s213 = sshll.u32 %s205, 4
          %s214 = int_to_ptr.vmem [resolvable:$true] %s213
          %219 = dma.hbm_to_vmem [thread:$0]  %s212, 192, %s214, %s202, 64, 64, 4
        $region28: #{tpu_custom_call.1} parent=23 // pred_fallthru
          _
        // Predicated region
        $region29: #{tpu_custom_call.1} parent=23 // pred_check
          %p220 = pneg %p125
        $region30: #{tpu_custom_call.1} parent=23 // pred_check_branch
          %222 = sbr.rel (%p220) target = $region32
        $region31: #{tpu_custom_call.1} parent=23 // pred_region
          %s223 = sand.u32 %s115, 1
          %s224 = scalar_lea.sflag [#allocation10], %s223
          %s225 = sand.u32 %s115, 1
          %s226 = smul.addr %s225, 12
          %s227 = scalar_lea.vmem [#allocation9], %s226
          %s229 = ssub.s32 192, 192
          %230 = vsyncadd %s224, %s229
          %s231 = smul.addr %s28, 3
          %s232 = sadd.s32 %s29, %s231
          %s233 = smul.addr %s232, 64
          %s234 = scalar_lea.hbm %s3, %s233
          %s235 = sshll.u32 %s227, 4
          %s236 = int_to_ptr.vmem [resolvable:$true] %s235
          %241 = dma.hbm_to_vmem [thread:$0]  %s234, 192, %s236, %s224, 64, 64, 4
        $region32: #{tpu_custom_call.1} parent=23 // pred_fallthru
          _
      $region24: #{tpu_custom_call.1} parent=5 // pred_fallthru
        _
      %p242 = scmp.le.s32.totalorder 1, %s21
      %p243 = scmp.lt.s32.totalorder %s21, 3
      %p244 = pnand %p242, %p243
      %p245 = pneg %p244
      // Predicated region
      $region33: #{tpu_custom_call.1} parent=5 // pred_check
        _
      $region34: #{tpu_custom_call.1} parent=5 // pred_check_branch
        %247 = sbr.rel (%p244) target = $region36
      $region35: #{tpu_custom_call.1} parent=5 // pred_region
        %s248 = ssub.s32 %s21, 1
        // Predicated region
        $region37: #{tpu_custom_call.1} parent=35 // pred_check
          %p249 = pneg %p54
        $region38: #{tpu_custom_call.1} parent=35 // pred_check_branch
          %251 = sbr.rel (%p249) target = $region40
        $region39: #{tpu_custom_call.1} parent=35 // pred_region
          %252 = dma.done [#allocation5], 16
        $region40: #{tpu_custom_call.1} parent=35 // pred_fallthru
          _
        // Predicated region
        $region41: #{tpu_custom_call.1} parent=35 // pred_check
          %p253 = pneg %p75
        $region42: #{tpu_custom_call.1} parent=35 // pred_check_branch
          %255 = sbr.rel (%p253) target = $region44
        $region43: #{tpu_custom_call.1} parent=35 // pred_region
          %256 = dma.done [#allocation6], 16
        $region44: #{tpu_custom_call.1} parent=35 // pred_fallthru
          _
        %s257 = sand.u32 %s90, 1
        %s258 = scalar_lea.sflag [#allocation3], %s257
        %s259 = sand.u32 %s90, 1
        %s260 = smul.addr %s259, 12
        %s261 = scalar_lea.vmem [#allocation8], %s260
        // Predicated region
        $region45: #{tpu_custom_call.1} parent=35 // pred_check
          %p262 = pneg %p103
        $region46: #{tpu_custom_call.1} parent=35 // pred_check_branch
          %264 = sbr.rel (%p262) target = $region48
        $region47: #{tpu_custom_call.1} parent=35 // pred_region
          %265 = dma.done %s258, 192
        $region48: #{tpu_custom_call.1} parent=35 // pred_fallthru
          _
        %s266 = sand.u32 %s118, 1
        %s267 = scalar_lea.sflag [#allocation10], %s266
        %s268 = sand.u32 %s118, 1
        %s269 = smul.addr %s268, 12
        %s270 = scalar_lea.vmem [#allocation9], %s269
        // Predicated region
        $region49: #{tpu_custom_call.1} parent=35 // pred_check
          %p271 = pneg %p131
        $region50: #{tpu_custom_call.1} parent=35 // pred_check_branch
          %273 = sbr.rel (%p271) target = $region52
        $region51: #{tpu_custom_call.1} parent=35 // pred_region
          %274 = dma.done %s267, 192
        $region52: #{tpu_custom_call.1} parent=35 // pred_fallthru
          _
        %275 = sfence
        %p276 = pneg %p54
        %p277 = pneg %p51
        %p278 = pneg %p75
        %p279 = pneg %p72
        %s280 = sand.u32 %s90, 1
        %s281 = scalar_lea.sflag [#allocation3], %s280
        %s282 = sand.u32 %s90, 1
        %s283 = smul.addr %s282, 12
        %s284 = scalar_lea.vmem [#allocation8], %s283
        %p285 = pneg %p103
        %p286 = pneg %p100
        %s287 = sand.u32 %s118, 1
        %s288 = scalar_lea.sflag [#allocation10], %s287
        %s289 = sand.u32 %s118, 1
        %s290 = smul.addr %s289, 12
        %s291 = scalar_lea.vmem [#allocation9], %s290
        %p292 = pneg %p131
        %p293 = pneg %p128
        %p294 = pneg %p159
        %p295 = pneg %p156
        %s296 = sand.u32 %s146, 1
        %s297 = scalar_lea.sflag [#allocation4], %s296
        %s298 = sand.u32 %s146, 1
        %s299 = smul.addr %s298, 228
        %s300 = scalar_lea.vmem [#allocation11], %s299
        %s301 = sld [smem:[#allocation7]]
        %v302 = vstv %s301
        %303 = vst [vmem:[%s300] sm:$0xff] %v302
        %304 = vst [vmem:[%s300 + $0x8] sm:$0xff] %v302
        %305 = vst [vmem:[%s300 + $0x10] sm:$0xff] %v302
        %306 = vst [vmem:[%s300 + $0x18] sm:$0xff] %v302
        %307 = vst [vmem:[%s300 + $0x20] sm:$0xff] %v302
        %308 = vst [vmem:[%s300 + $0x28] sm:$0xff] %v302
        %309 = vst [vmem:[%s300 + $0x30] sm:$0xff] %v302
        %310 = vst [vmem:[%s300 + $0x38] sm:$0xff] %v302
        %311 = vst [vmem:[%s300 + $0x40] sm:$0xff] %v302
        %vm312 = vcmask 781312
        %313 = vst.msk [vmem:[%s300 + $0x48] sm:$0xf] %vm312, %v302
        %s314 = sld [smem:[#allocation7 + $0x1]]
        %v315 = vstv %s314
        %s316 = scalar_lea.vmem %s300, 76 [#allocation11]
        %317 = vst [vmem:[%s316] sm:$0xff] %v315
        %318 = vst [vmem:[%s316 + $0x8] sm:$0xff] %v315
        %319 = vst [vmem:[%s316 + $0x10] sm:$0xff] %v315
        %320 = vst [vmem:[%s316 + $0x18] sm:$0xff] %v315
        %321 = vst [vmem:[%s316 + $0x20] sm:$0xff] %v315
        %322 = vst [vmem:[%s316 + $0x28] sm:$0xff] %v315
        %323 = vst [vmem:[%s316 + $0x30] sm:$0xff] %v315
        %324 = vst [vmem:[%s316 + $0x38] sm:$0xff] %v315
        %325 = vst [vmem:[%s316 + $0x40] sm:$0xff] %v315
        %326 = vst.msk [vmem:[%s316 + $0x48] sm:$0xf] %vm312, %v315
        %s327 = sld [smem:[#allocation7 + $0x2]]
        %v328 = vstv %s327
        %s329 = scalar_lea.vmem %s300, 152 [#allocation11]
        %330 = vst [vmem:[%s329] sm:$0xff] %v328
        %331 = vst [vmem:[%s329 + $0x8] sm:$0xff] %v328
        %332 = vst [vmem:[%s329 + $0x10] sm:$0xff] %v328
        %333 = vst [vmem:[%s329 + $0x18] sm:$0xff] %v328
        %334 = vst [vmem:[%s329 + $0x20] sm:$0xff] %v328
        %335 = vst [vmem:[%s329 + $0x28] sm:$0xff] %v328
        %336 = vst [vmem:[%s329 + $0x30] sm:$0xff] %v328
        %337 = vst [vmem:[%s329 + $0x38] sm:$0xff] %v328
        %338 = vst [vmem:[%s329 + $0x40] sm:$0xff] %v328
        %339 = vst.msk [vmem:[%s329 + $0x48] sm:$0xf] %vm312, %v328
        %s340 = sld [smem:[#allocation7]]
        %v341 = vld [vmem:[%s261] sm:$0xf]
        %s342 = sld [smem:[#allocation2 + $0x9]]
        %v343 = vstv %s342
        %v344 = vmul.f32 %v343, %v341
        %v345 = vadd.f32 %v344, 0.0
        %s346 = sld [smem:[#allocation2 + $0x12]]
        %v347 = vstv %s346
        %v348 = vmul.f32 %v347, %v341
        %v349 = vadd.f32 %v348, 0.0
        %v350 = vld [vmem:[%s270] sm:$0xf]
        %s351 = sld [smem:[#allocation2]]
        %v352 = vstv %s351
        %v353 = vmul.f32 %v352, %v350
        %v354 = vadd.f32 %v353, 0.0
        %s355 = sadd.s32 0, 4
        %s356 = scalar_lea.vmem %s261, %s355 [#allocation8]
        %v357 = vld [vmem:[%s356] sm:$0xf]
        %s358 = sld [smem:[#allocation2 + $0xc]]
        %v359 = vstv %s358
        %v360 = vmul.f32 %v359, %v357
        %v361 = vadd.f32 %v345, %v360
        %s362 = sld [smem:[#allocation2 + $0x15]]
        %v363 = vstv %s362
        %v364 = vmul.f32 %v363, %v357
        %v365 = vadd.f32 %v349, %v364
        %s366 = scalar_lea.vmem %s270, %s355 [#allocation9]
        %v367 = vld [vmem:[%s366] sm:$0xf]
        %s368 = sld [smem:[#allocation2 + $0x3]]
        %v369 = vstv %s368
        %v370 = vmul.f32 %v369, %v367
        %v371 = vadd.f32 %v354, %v370
        %s372 = sadd.s32 0, 8
        %s373 = scalar_lea.vmem %s261, %s372 [#allocation8]
        %v374 = vld [vmem:[%s373] sm:$0xf]
        %s375 = sld [smem:[#allocation2 + $0xf]]
        %v376 = vstv %s375
        %v377 = vmul.f32 %v376, %v374
        %v378 = vadd.f32 %v361, %v377
        %s379 = sld [smem:[#allocation2 + $0x18]]
        %v380 = vstv %s379
        %v381 = vmul.f32 %v380, %v374
        %v382 = vadd.f32 %v365, %v381
        %s383 = scalar_lea.vmem %s270, %s372 [#allocation9]
        %v384 = vld [vmem:[%s383] sm:$0xf]
        %s385 = sld [smem:[#allocation2 + $0x6]]
        %v386 = vstv %s385
        %v387 = vmul.f32 %v386, %v384
        %v388 = vadd.f32 %v371, %v387
        %v389 = vstv %s340
        %v390 = vadd.f32 %v378, %v389
        %s391 = smul.u32 0, 19
        %s392 = smul.addr %s391, 4
        %s393 = scalar_lea.vmem %s300, %s392 [#allocation11]
        %vm394 = vcmask 60416
        %395 = vst.msk [vmem:[%s393] sm:$0xf] %vm394, %v390
        %v396 = vadd.f32 %v382, %v389
        %398 = vrot.lane.b32.xlu0 %v396, 8
        %v399 = vpop.permute.xlu0 %398
        %vm401 = vcmask 126016
        %402 = vst.msk [vmem:[%s393] sm:$0xf] %vm401, %v399
        %v403 = vadd.f32 %v388, %v389
        %405 = vrot.lane.b32.xlu0 %v403, 88
        %v406 = vpop.permute.xlu0 %405
        %vm408 = vcmask 782016
        %409 = vst.msk [vmem:[%s393 + $0x48] sm:$0xf] %vm408, %v406
        %s410 = sld [smem:[#allocation7 + $0x1]]
        %v411 = vld [vmem:[%s261] sm:$0xf]
        %s412 = sld [smem:[#allocation2 + $0xa]]
        %v413 = vstv %s412
        %v414 = vmul.f32 %v413, %v411
        %v415 = vadd.f32 %v414, 0.0
        %s416 = sld [smem:[#allocation2 + $0x13]]
        %v417 = vstv %s416
        %v418 = vmul.f32 %v417, %v411
        %v419 = vadd.f32 %v418, 0.0
        %v420 = vld [vmem:[%s270] sm:$0xf]
        %s421 = sld [smem:[#allocation2 + $0x1]]
        %v422 = vstv %s421
        %v423 = vmul.f32 %v422, %v420
        %v424 = vadd.f32 %v423, 0.0
        %v425 = vld [vmem:[%s356] sm:$0xf]
        %s426 = sld [smem:[#allocation2 + $0xd]]
        %v427 = vstv %s426
        %v428 = vmul.f32 %v427, %v425
        %v429 = vadd.f32 %v415, %v428
        %s430 = sld [smem:[#allocation2 + $0x16]]
        %v431 = vstv %s430
        %v432 = vmul.f32 %v431, %v425
        %v433 = vadd.f32 %v419, %v432
        %v434 = vld [vmem:[%s366] sm:$0xf]
        %s435 = sld [smem:[#allocation2 + $0x4]]
        %v436 = vstv %s435
        %v437 = vmul.f32 %v436, %v434
        %v438 = vadd.f32 %v424, %v437
        %v439 = vld [vmem:[%s373] sm:$0xf]
        %s440 = sld [smem:[#allocation2 + $0x10]]
        %v441 = vstv %s440
        %v442 = vmul.f32 %v441, %v439
        %v443 = vadd.f32 %v429, %v442
        %s444 = sld [smem:[#allocation2 + $0x19]]
        %v445 = vstv %s444
        %v446 = vmul.f32 %v445, %v439
        %v447 = vadd.f32 %v433, %v446
        %v448 = vld [vmem:[%s383] sm:$0xf]
        %s449 = sld [smem:[#allocation2 + $0x7]]
        %v450 = vstv %s449
        %v451 = vmul.f32 %v450, %v448
        %v452 = vadd.f32 %v438, %v451
        %v453 = vstv %s410
        %v454 = vadd.f32 %v443, %v453
        %s455 = sadd.s32 %s391, 19
        %s456 = smul.addr %s455, 4
        %s457 = scalar_lea.vmem %s300, %s456 [#allocation11]
        %458 = vst.msk [vmem:[%s457] sm:$0xf] %vm394, %v454
        %v459 = vadd.f32 %v447, %v453
        %461 = vrot.lane.b32.xlu0 %v459, 8
        %v462 = vpop.permute.xlu0 %461
        %464 = vst.msk [vmem:[%s457] sm:$0xf] %vm401, %v462
        %v465 = vadd.f32 %v452, %v453
        %467 = vrot.lane.b32.xlu0 %v465, 88
        %v468 = vpop.permute.xlu0 %467
        %470 = vst.msk [vmem:[%s457 + $0x48] sm:$0xf] %vm408, %v468
        %s471 = sld [smem:[#allocation7 + $0x2]]
        %v472 = vld [vmem:[%s261] sm:$0xf]
        %s473 = sld [smem:[#allocation2 + $0xb]]
        %v474 = vstv %s473
        %v475 = vmul.f32 %v474, %v472
        %v476 = vadd.f32 %v475, 0.0
        %s477 = sld [smem:[#allocation2 + $0x14]]
        %v478 = vstv %s477
        %v479 = vmul.f32 %v478, %v472
        %v480 = vadd.f32 %v479, 0.0
        %v481 = vld [vmem:[%s270] sm:$0xf]
        %s482 = sld [smem:[#allocation2 + $0x2]]
        %v483 = vstv %s482
        %v484 = vmul.f32 %v483, %v481
        %v485 = vadd.f32 %v484, 0.0
        %v486 = vld [vmem:[%s356] sm:$0xf]
        %s487 = sld [smem:[#allocation2 + $0xe]]
        %v488 = vstv %s487
        %v489 = vmul.f32 %v488, %v486
        %v490 = vadd.f32 %v476, %v489
        %s491 = sld [smem:[#allocation2 + $0x17]]
        %v492 = vstv %s491
        %v493 = vmul.f32 %v492, %v486
        %v494 = vadd.f32 %v480, %v493
        %v495 = vld [vmem:[%s366] sm:$0xf]
        %s496 = sld [smem:[#allocation2 + $0x5]]
        %v497 = vstv %s496
        %v498 = vmul.f32 %v497, %v495
        %v499 = vadd.f32 %v485, %v498
        %v500 = vld [vmem:[%s373] sm:$0xf]
        %s501 = sld [smem:[#allocation2 + $0x11]]
        %v502 = vstv %s501
        %v503 = vmul.f32 %v502, %v500
        %v504 = vadd.f32 %v490, %v503
        %s505 = sld [smem:[#allocation2 + $0x1a]]
        %v506 = vstv %s505
        %v507 = vmul.f32 %v506, %v500
        %v508 = vadd.f32 %v494, %v507
        %v509 = vld [vmem:[%s383] sm:$0xf]
        %s510 = sld [smem:[#allocation2 + $0x8]]
        %v511 = vstv %s510
        %v512 = vmul.f32 %v511, %v509
        %v513 = vadd.f32 %v499, %v512
        %v514 = vstv %s471
        %v515 = vadd.f32 %v504, %v514
        %s516 = sadd.s32 %s391, 38
        %s517 = smul.addr %s516, 4
        %s518 = scalar_lea.vmem %s300, %s517 [#allocation11]
        %519 = vst.msk [vmem:[%s518] sm:$0xf] %vm394, %v515
        %v520 = vadd.f32 %v508, %v514
        %522 = vrot.lane.b32.xlu0 %v520, 8
        %v523 = vpop.permute.xlu0 %522
        %525 = vst.msk [vmem:[%s518] sm:$0xf] %vm401, %v523
        %v526 = vadd.f32 %v513, %v514
        %528 = vrot.lane.b32.xlu0 %v526, 88
        %v529 = vpop.permute.xlu0 %528
        %531 = vst.msk [vmem:[%s518 + $0x48] sm:$0xf] %vm408, %v529
        %s532 = sand.u32 %s146, 1
        %s533 = scalar_lea.sflag [#allocation4], %s532
        %s534 = sand.u32 %s146, 1
        %s535 = smul.addr %s534, 228
        %s536 = scalar_lea.vmem [#allocation11], %s535
        // Predicated region
        $region53: #{tpu_custom_call.1} parent=35 // pred_check
          %p537 = pneg %p156
        $region54: #{tpu_custom_call.1} parent=35 // pred_check_branch
          %539 = sbr.rel (%p537) target = $region56
        $region55: #{tpu_custom_call.1} parent=35 // pred_region
          %s541 = ssub.s32 3648, 3648
          %542 = vsyncadd %s533, %s541
          %s543 = smul.addr %s31, 19
          %s544 = smul.addr %s30, 57
          %s545 = sadd.s32 %s543, %s544
          %s546 = smul.addr %s545, 64
          %s547 = scalar_lea.hbm %s4, %s546
          %s548 = sshll.u32 %s536, 4
          %s549 = int_to_ptr.vmem [resolvable:$true] %s548
          %554 = dma.vmem_to_hbm [thread:$0]  %s549, 3648, %s547, %s533, 1216, 1216, 76
        $region56: #{tpu_custom_call.1} parent=35 // pred_fallthru
          _
      $region36: #{tpu_custom_call.1} parent=5 // pred_fallthru
        _
      %p555 = scmp.le.s32.totalorder 2, %s21
      // Predicated region
      $region57: #{tpu_custom_call.1} parent=5 // pred_check
        %p556 = pneg %p555
      $region58: #{tpu_custom_call.1} parent=5 // pred_check_branch
        %558 = sbr.rel (%p556) target = $region60
      $region59: #{tpu_custom_call.1} parent=5 // pred_region
        %s559 = ssub.s32 %s21, 2
        // Predicated region
        $region61: #{tpu_custom_call.1} parent=59 // pred_check
          %p560 = pneg %p162
        $region62: #{tpu_custom_call.1} parent=59 // pred_check_branch
          %562 = sbr.rel (%p560) target = $region64
        $region63: #{tpu_custom_call.1} parent=59 // pred_region
          %s563 = sand.u32 %s147, 1
          %s564 = scalar_lea.sflag [#allocation4], %s563
          %s565 = sand.u32 %s147, 1
          %s566 = smul.addr %s565, 228
          %s567 = scalar_lea.vmem [#allocation11], %s566
          %568 = dma.done %s564, 3648
        $region64: #{tpu_custom_call.1} parent=59 // pred_fallthru
          _
      $region60: #{tpu_custom_call.1} parent=5 // pred_fallthru
        _
    $region6: #{tpu_custom_call.1} parent=1 // loop_footer
      %s25 = sadd.s32 1, %s21
    $region7: #{tpu_custom_call.1} parent=1 // loop_footer_branch
      %20 = sbr.rel target = $region3
    $region8: #{tpu_custom_call.1} parent=1 // loop_exit
      _
    %569 = vsyncpa [#allocation3], 1
    %s570 = scalar_lea.sflag [#allocation3], 1
    %571 = vsyncpa %s570, 1
    %572 = vsyncpa [#allocation10], 1
    %s573 = scalar_lea.sflag [#allocation10], 1
    %574 = vsyncpa %s573, 1
    %575 = vsyncpa [#allocation4], 1
    %s576 = scalar_lea.sflag [#allocation4], 1
    %577 = vsyncpa %s576, 1
    %578 = vsyncpa [#allocation5], 1
    %s579 = scalar_lea.sflag [#allocation5], 1
    %580 = vsyncpa %s579, 1
    %581 = vsyncpa [#allocation6], 1
    %s582 = scalar_lea.sflag [#allocation6], 1
    %583 = vsyncpa %s582, 1

</llo_original>
